<compile_context>
chip_gen: v7x
topology: tpu7x:2x2x1
jax: 0.10.0
libtpu: 0.0.40
codegen_flags: <defaults>
</compile_context>

<pallas_src>
import functools
import math

import jax
import jax.numpy as jnp
from jax.experimental import pallas as pl
from jax.experimental.pallas import tpu as pltpu


def _round_up(x, m):
    return ((x + m - 1) // m) * m


def _attention_kernel(x_ref, w_ref, b_ref, o_ref, *, d_model, d_pad,
                      compute_dtype):
    """x_ref: (TB, S, D); w_ref: (D, 3*Dp) fused, lane-padded, Q-scale folded;
    b_ref: (1, 3*Dp) fused bias; o_ref: (TB, D)."""
    tb, s, d = x_ref.shape
    dp = d_pad

    # (TB, S, D) -> (TB*S, D): merges leading (sublane) dims only; the lane
    # dim is untouched, so this reshape is layout-free.
    x2 = x_ref[...].reshape(tb * s, d).astype(compute_dtype)

    # Fused QKV projection: one (TB*S, D) x (D, 3*Dp) MXU matmul, f32 acc.
    qkv = jnp.dot(x2, w_ref[...].astype(compute_dtype),
                  preferred_element_type=jnp.float32)
    qkv = qkv + b_ref[...]                       # (1, 3*Dp) broadcasts over rows
    qkv = qkv.reshape(tb, s, 3 * dp)

    # Lane-tile-aligned slices (Dp % 128 == 0); padded tail lanes are zero.
    q = qkv[..., 0 * dp:1 * dp]                  # already scaled by 1/sqrt(D)
    k = qkv[..., 1 * dp:2 * dp]
    v = qkv[..., 2 * dp:3 * dp]

    # logits[b, s] = <Q[b,s,:], K[b,s,:]> / sqrt(D)  (scale folded into Wq/bq;
    # zero padding lanes contribute nothing to the lane reduce).
    logits = jnp.sum(q * k, axis=-1)             # (TB, S)   XLU lane reduce

    # Numerically stable softmax over the sequence axis.
    m = jnp.max(logits, axis=-1, keepdims=True)  # (TB, 1)
    e = jnp.exp(logits - m)                      # (TB, S)   EUP
    l = jnp.sum(e, axis=-1, keepdims=True)       # (TB, 1)

    # out[b, :] = (e[b, :] @ V[b]) / l[b] — S-reduction on the MXU as a
    # batched matmul (same pattern as flash-attention's 'bqk,bkd->bqd').
    num = jnp.einsum("bqs,bsd->bqd", e[:, None, :], v,
                     preferred_element_type=jnp.float32)     # (TB, 1, Dp)
    out = num.reshape(tb, dp) / l                             # (TB, Dp)
    o_ref[...] = out[:, :d_model].astype(o_ref.dtype)


def attention_forward(x, wq, wk, wv, bq, bk, bv, *, block_b=None,
                      compute_dtype=jnp.float32):
    """Pallas forward of the PyTorch Attention module.

    x:  (B, S, D) activations.
    wq/wk/wv: (D, D) weights in PyTorch nn.Linear layout (out_feat, in_feat).
    bq/bk/bv: (D,) biases.
    Returns (B, D).
    """
    B, S, D = x.shape
    Dp = _round_up(D, 128)                    # lane-aligned per-projection width
    inv_sqrt_d = 1.0 / math.sqrt(float(D))
    f32 = jnp.float32

    # One-time parameter fusion:  x @ [(Wq/sqrt(D))^T | Wk^T | Wv^T] + bias,
    # each projection padded to Dp output columns (pad cols/bias are zero).
    w_qkv = jnp.zeros((D, 3 * Dp), f32)
    w_qkv = w_qkv.at[:, 0 * Dp:0 * Dp + D].set(wq.T.astype(f32) * inv_sqrt_d)
    w_qkv = w_qkv.at[:, 1 * Dp:1 * Dp + D].set(wk.T.astype(f32))
    w_qkv = w_qkv.at[:, 2 * Dp:2 * Dp + D].set(wv.T.astype(f32))
    b_qkv = jnp.zeros((1, 3 * Dp), f32)
    b_qkv = b_qkv.at[0, 0 * Dp:0 * Dp + D].set(bq.astype(f32) * inv_sqrt_d)
    b_qkv = b_qkv.at[0, 1 * Dp:1 * Dp + D].set(bk.astype(f32))
    b_qkv = b_qkv.at[0, 2 * Dp:2 * Dp + D].set(bv.astype(f32))

    # Batch-block size: biggest block whose double-buffered x tile plus qkv
    # intermediates stays well inside scoped VMEM on every generation.
    if block_b is None:
        target_x_block_bytes = 4 << 20                       # ~4 MiB per x block
        block_b = max(1, target_x_block_bytes // max(1, S * D * x.dtype.itemsize))
    block_b = int(min(block_b, B))
    if B >= 8:
        block_b = max(8, (block_b // 8) * 8)  # sublane-aligned output blocks
    grid = (pl.cdiv(B, block_b),)

    # Explicit scoped-VMEM request: double-buffered blocks + intermediates,
    # capped below v7x's 64 MiB physical VMEM.
    blk_bytes = 4 * (block_b * S * D            # x block
                     + D * 3 * Dp + 3 * Dp      # fused weight / bias
                     + block_b * S * 3 * Dp     # qkv intermediate
                     + block_b * Dp)            # output block
    vmem_limit = int(min(max(4 * blk_bytes, 32 << 20), 48 << 20))

    kernel = functools.partial(_attention_kernel, d_model=D, d_pad=Dp,
                               compute_dtype=compute_dtype)
    return pl.pallas_call(
        kernel,
        out_shape=jax.ShapeDtypeStruct((B, D), x.dtype),
        grid=grid,
        in_specs=[
            pl.BlockSpec((block_b, S, D), lambda b: (b, 0, 0)),   # x block
            pl.BlockSpec((D, 3 * Dp), lambda b: (0, 0)),          # fused W
            pl.BlockSpec((1, 3 * Dp), lambda b: (0, 0)),          # fused bias
        ],
        out_specs=pl.BlockSpec((block_b, D), lambda b: (b, 0)),
        compiler_params=pltpu.CompilerParams(
            dimension_semantics=("parallel",),
            vmem_limit_bytes=vmem_limit),
    )(x, w_qkv, b_qkv)


def _reference(x, wq, wk, wv, bq, bk, bv):
    # PyTorch-layout weights: y = x @ W.T + b
    q = jnp.einsum("bsd,ed->bse", x, wq) + bq
    k = jnp.einsum("bsd,ed->bse", x, wk) + bk
    v = jnp.einsum("bsd,ed->bse", x, wv) + bv
    a = jnp.sum(q * k, axis=-1) / jnp.sqrt(jnp.float32(x.shape[-1]))
    a = jax.nn.softmax(a, axis=1)
    return jnp.sum(a[:, :, None] * v, axis=1)


if __name__ == "__main__":
    B, S, D = 16, 8, 32          # small, but exercises the batch grid (2 steps)
    key = jax.random.PRNGKey(0)
    kx, kq, kk, kv, kbq, kbk, kbv = jax.random.split(key, 7)

    x = jax.random.normal(kx, (B, S, D), dtype=jnp.float32)

    # Deterministic synthetic parameters in PyTorch nn.Linear layout (out, in).
    scale = 1.0 / jnp.sqrt(jnp.float32(D))
    wq = jax.random.uniform(kq, (D, D), jnp.float32, -1, 1) * scale
    wk = jax.random.uniform(kk, (D, D), jnp.float32, -1, 1) * scale
    wv = jax.random.uniform(kv, (D, D), jnp.float32, -1, 1) * scale
    bq = jax.random.uniform(kbq, (D,), jnp.float32, -1, 1) * scale
    bk = jax.random.uniform(kbk, (D,), jnp.float32, -1, 1) * scale
    bv = jax.random.uniform(kbv, (D,), jnp.float32, -1, 1) * scale

    out = attention_forward(x, wq, wk, wv, bq, bk, bv, block_b=8)  # grid=(2,)
    out = jax.block_until_ready(out)

    ref = _reference(x, wq, wk, wv, bq, bk, bv)
    assert out.shape == (B, D)
    assert jnp.allclose(out, ref, rtol=2e-5, atol=2e-5), "mismatch vs reference"

    print("KERNEL_OK")
</pallas_src>

<mosaic_0001>
module attributes {stable_mosaic.version = 11 : i64} {
  func.func @_attention_kernel(%arg0: i32, %arg1: memref<8x8x32xf32, #tpu.memory_space<vmem>>, %arg2: memref<32x384xf32, #tpu.memory_space<vmem>>, %arg3: memref<1x384xf32, #tpu.memory_space<vmem>>, %arg4: memref<8x32xf32, #tpu.memory_space<vmem>>) attributes {dimension_semantics = [#tpu.dimension_semantics<parallel>], iteration_bounds = array<i64: 2>, scalar_prefetch = 0 : i64, scratch_operands = 0 : i64, tpu.core_type = #tpu.core_type<tc>, window_params = [{transform_indices = @transform_0, window_bounds = array<i64: 8, 8, 32>}, {pipeline_mode = #tpu.pipeline_mode<synchronous>, transform_indices = @transform_1, window_bounds = array<i64: 32, 384>}, {pipeline_mode = #tpu.pipeline_mode<synchronous>, transform_indices = @transform_2, window_bounds = array<i64: 1, 384>}, {transform_indices = @transform_3, window_bounds = array<i64: 8, 32>}]} {
    %c0 = arith.constant 0 : index
    %c0_0 = arith.constant 0 : index
    %c0_1 = arith.constant 0 : index
    %0 = vector.load %arg1[%c0, %c0_0, %c0_1] : memref<8x8x32xf32, #tpu.memory_space<vmem>>, vector<8x8x32xf32>
    %1 = vector.shape_cast %0 : vector<8x8x32xf32> to vector<64x32xf32>
    %c0_2 = arith.constant 0 : index
    %c0_3 = arith.constant 0 : index
    %2 = vector.load %arg2[%c0_2, %c0_3] : memref<32x384xf32, #tpu.memory_space<vmem>>, vector<32x384xf32>
    %cst = arith.constant dense<0.000000e+00> : vector<64x384xf32>
    %3 = tpu.matmul %1, %2, %cst {dimension_numbers = #tpu.dot_dimension_numbers<[1], [0], [0], [1], [0, 0, 1, 1], [], []>} : vector<64x32xf32>, vector<32x384xf32>, vector<64x384xf32> -> vector<64x384xf32>
    %c0_4 = arith.constant 0 : index
    %c0_5 = arith.constant 0 : index
    %4 = vector.load %arg3[%c0_4, %c0_5] : memref<1x384xf32, #tpu.memory_space<vmem>>, vector<1x384xf32>
    %5 = vector.broadcast %4 : vector<1x384xf32> to vector<64x384xf32>
    %6 = arith.addf %3, %5 : vector<64x384xf32>
    %7 = vector.shape_cast %6 : vector<64x384xf32> to vector<8x8x384xf32>
    %8 = vector.extract_strided_slice %7 {offsets = [0, 0, 0], sizes = [8, 8, 128], strides = [1, 1, 1]} : vector<8x8x384xf32> to vector<8x8x128xf32>
    %9 = vector.extract_strided_slice %7 {offsets = [0, 0, 128], sizes = [8, 8, 128], strides = [1, 1, 1]} : vector<8x8x384xf32> to vector<8x8x128xf32>
    %10 = vector.extract_strided_slice %7 {offsets = [0, 0, 256], sizes = [8, 8, 128], strides = [1, 1, 1]} : vector<8x8x384xf32> to vector<8x8x128xf32>
    %11 = arith.mulf %8, %9 : vector<8x8x128xf32>
    %cst_6 = arith.constant dense<0.000000e+00> : vector<8x8xf32>
    %12 = vector.multi_reduction <add>, %11, %cst_6 [2] : vector<8x8x128xf32> to vector<8x8xf32>
    %cst_7 = arith.constant dense<0xFF800000> : vector<8xf32>
    %13 = vector.multi_reduction <maximumf>, %12, %cst_7 [1] : vector<8x8xf32> to vector<8xf32>
    %14 = vector.shape_cast %13 : vector<8xf32> to vector<8x1xf32>
    %15 = vector.broadcast %14 : vector<8x1xf32> to vector<8x8xf32>
    %16 = arith.subf %12, %15 : vector<8x8xf32>
    %17 = math.exp %16 : vector<8x8xf32>
    %cst_8 = arith.constant dense<0.000000e+00> : vector<8xf32>
    %18 = vector.multi_reduction <add>, %17, %cst_8 [1] : vector<8x8xf32> to vector<8xf32>
    %19 = vector.shape_cast %18 : vector<8xf32> to vector<8x1xf32>
    %20 = vector.shape_cast %17 : vector<8x8xf32> to vector<8x1x8xf32>
    "tpu.trace_start"() <{level = 10 : i32, message = "bqs,bsd->bqd"}> : () -> ()
    %cst_9 = arith.constant dense<0.000000e+00> : vector<8x1x128xf32>
    %21 = tpu.matmul %20, %10, %cst_9 {dimension_numbers = #tpu.dot_dimension_numbers<[2], [1], [1], [2], [0, 0, 0, 1, 1, 2], [0], [0]>} : vector<8x1x8xf32>, vector<8x8x128xf32>, vector<8x1x128xf32> -> vector<8x1x128xf32>
    "tpu.trace_stop"() : () -> ()
    %22 = vector.shape_cast %21 : vector<8x1x128xf32> to vector<8x128xf32>
    %23 = vector.broadcast %19 : vector<8x1xf32> to vector<8x128xf32>
    %24 = arith.divf %22, %23 : vector<8x128xf32>
    %25 = vector.extract_strided_slice %24 {offsets = [0, 0], sizes = [8, 32], strides = [1, 1]} : vector<8x128xf32> to vector<8x32xf32>
    %c0_10 = arith.constant 0 : index
    %c0_11 = arith.constant 0 : index
    %26 = vector.load %arg4[%c0_10, %c0_11] : memref<8x32xf32, #tpu.memory_space<vmem>>, vector<8x32xf32>
    tpu.vector_store %arg4[%c0_10, %c0_11], %25 {strides = array<i32>} : memref<8x32xf32, #tpu.memory_space<vmem>>, vector<8x32xf32>,
    return
  }
  func.func @transform_0(%arg0: i32) -> (i32, i32, i32) {
    %c0_i32 = arith.constant 0 : i32
    %c0_i32_0 = arith.constant 0 : i32
    %c0_i32_1 = arith.constant 0 : i32
    return %arg0, %c0_i32, %c0_i32_0 : i32, i32, i32
  }
  func.func @transform_1(%arg0: i32) -> (i32, i32) {
    %c0_i32 = arith.constant 0 : i32
    %c0_i32_0 = arith.constant 0 : i32
    %c0_i32_1 = arith.constant 0 : i32
    return %c0_i32, %c0_i32_0 : i32, i32
  }
  func.func @transform_2(%arg0: i32) -> (i32, i32) {
    %c0_i32 = arith.constant 0 : i32
    %c0_i32_0 = arith.constant 0 : i32
    %c0_i32_1 = arith.constant 0 : i32
    return %c0_i32, %c0_i32_0 : i32, i32
  }
  func.func @transform_3(%arg0: i32) -> (i32, i32) {
    %c0_i32 = arith.constant 0 : i32
    %c0_i32_0 = arith.constant 0 : i32
    return %arg0, %c0_i32 : i32, i32
  }
}

</mosaic_0001>

<llo_original>
// kernel: tpu_custom_call.1
$region0: #{tpu_custom_call.1}
  #allocation0 [shape = 'u32[]', space=smem, size = 0x4, offset = 0x4, fixed_abs, tag = 'smem constant byte address 0x4 - core index']
  #allocation1 [shape = 'u32[144,128]{1,0:T(1,128)}', space=vmem, size = 0x12000, scoped, tag = 'internal scratch']
  %s0 = inlined_call_operand.hbm [shape: f32[16,8,32], index: 0, kind: input, shape index: {}]
  %s1 = inlined_call_operand.hbm [shape: f32[32,384], index: 1, kind: input, shape index: {}]
  %s2 = inlined_call_operand.vmem [shape: f32[1,384], index: 2, kind: input, shape index: {}]
  %s3 = inlined_call_operand.hbm [shape: f32[16,32], index: 3, kind: output, shape index: {}]
  %s4 = sld [smem:[#allocation0]]
  $region53: #{tpu_custom_call.1} parent=0
    _
  %s6 = ssub.s32 1, %s4
  %s7 = scalar_select 0, %s6, %s4
  $region1: #{tpu_custom_call.1} parent=0
    #allocation2 [shape = 'u8[65536]{0}', space=vmem, size = 0x10000, scoped, tag = 'input window, operand 0']
    #allocation3 [shape = 's32[2]{0}', space=sflag, size = 0x8, scoped, tag = 'scoped memory for tpu_custom_call.1']
    #allocation4 [shape = 's32[2]{0}', space=sflag, size = 0x8, scoped, tag = 'scoped memory for tpu_custom_call.1']
    #allocation5 [shape = 'u8[49152]{0}', space=vmem, size = 0xc000, scoped, tag = 'input window, operand 1, single buffered']
    #allocation6 [shape = 's32[1]{0}', space=sflag, size = 0x4, scoped, tag = 'scoped memory for tpu_custom_call.1']
    #allocation7 [shape = 'u8[8192]{0}', space=vmem, size = 0x2000, scoped, tag = 'output window, operand 0']
    %8 = vsyncpa [#allocation3], 0
    %s9 = scalar_lea.sflag [#allocation3], 1
    %10 = vsyncpa %s9, 0
    %11 = vsyncpa [#allocation6], 0
    %12 = vsyncpa [#allocation4], 0
    %s13 = scalar_lea.sflag [#allocation4], 1
    %14 = vsyncpa %s13, 0
    loop: start=0, step=1, limit=4
    $region2: #{tpu_custom_call.1} parent=1 // loop_pre_header
      _
    $region3: #{tpu_custom_call.1} parent=1 // loop_header
      %s16 = sphi 0, %s20
      %p17 = scmp.ge.s32.totalorder %s16, 4
      %s26 = sphi 0, %s28
      %s29 = sphi 0, %s26
      %s30 = sphi 0, %s29
      %s46 = sphi 0, %s30
      %s50 = sphi 0, %s50
      %s52 = sphi 0, %s50
      %s53 = sphi 0, %s52
      %s67 = sphi 0, %s53
      %s71 = sphi 0, %s71
      %s73 = sphi 0, %s71
      %s74 = sphi 0, %s73
      %s88 = sphi 0, %s74
      %s94 = sphi 0, %s96
      %s97 = sphi 0, %s94
      %s98 = sphi 0, %s97
      %s114 = sphi 0, %s98
    $region4: #{tpu_custom_call.1} parent=1 // loop_header_branch
      %19 = sbr.rel (%p17) target = $region8
    $region5: #{tpu_custom_call.1} parent=1 // loop_body
      %s21 = ssub.s32 %s16, 1
      %s22 = ssub.s32 %s16, 2
      %s23 = sadd.s32 %s16, 1
      %s24 = ssub.s32 %s16, %s23
      %p25 = scmp.eq.s32.totalorder %s24, 0
      %s27 = sadd.s32 %s26, 1
      %s28 = scalar_select %p25, %s26, %s27
      %p31 = pneg %p25
      %p32 = scmp.eq.s32.totalorder %s16, 1
      %p33 = por %p31, %p32
      %p34 = scmp.ne.s32.totalorder %s26, %s29
      %p35 = scmp.eq.s32.totalorder %s16, 0
      %p36 = por %p34, %p35
      %p37 = scmp.ne.s32.totalorder %s26, %s29
      %p38 = scmp.eq.s32.totalorder %s21, 1
      %p39 = por %p37, %p38
      %p40 = scmp.ne.s32.totalorder %s29, %s30
      %p41 = scmp.eq.s32.totalorder %s21, 0
      %p42 = por %p40, %p41
      %p43 = scmp.ne.s32.totalorder %s29, %s30
      %p44 = scmp.eq.s32.totalorder %s22, 1
      %p45 = por %p43, %p44
      %p47 = scmp.ne.s32.totalorder %s30, %s46
      %p48 = scmp.eq.s32.totalorder %s22, 0
      %p49 = por %p47, %p48
      %s51 = sadd.s32 %s50, 1
      %p54 = scmp.eq.s32.totalorder %s16, 1
      %p55 = scmp.ne.s32.totalorder %s50, %s52
      %p56 = scmp.eq.s32.totalorder %s16, 0
      %p57 = por %p55, %p56
      %p58 = scmp.ne.s32.totalorder %s50, %s52
      %p59 = scmp.eq.s32.totalorder %s21, 1
      %p60 = por %p58, %p59
      %p61 = scmp.ne.s32.totalorder %s52, %s53
      %p62 = scmp.eq.s32.totalorder %s21, 0
      %p63 = por %p61, %p62
      %p64 = scmp.ne.s32.totalorder %s52, %s53
      %p65 = scmp.eq.s32.totalorder %s22, 1
      %p66 = por %p64, %p65
      %p68 = scmp.ne.s32.totalorder %s53, %s67
      %p69 = scmp.eq.s32.totalorder %s22, 0
      %p70 = por %p68, %p69
      %s72 = sadd.s32 %s71, 1
      %p75 = scmp.eq.s32.totalorder %s16, 1
      %p76 = scmp.ne.s32.totalorder %s71, %s73
      %p77 = scmp.eq.s32.totalorder %s16, 0
      %p78 = por %p76, %p77
      %p79 = scmp.ne.s32.totalorder %s71, %s73
      %p80 = scmp.eq.s32.totalorder %s21, 1
      %p81 = por %p79, %p80
      %p82 = scmp.ne.s32.totalorder %s73, %s74
      %p83 = scmp.eq.s32.totalorder %s21, 0
      %p84 = por %p82, %p83
      %p85 = scmp.ne.s32.totalorder %s73, %s74
      %p86 = scmp.eq.s32.totalorder %s22, 1
      %p87 = por %p85, %p86
      %p89 = scmp.ne.s32.totalorder %s74, %s88
      %p90 = scmp.eq.s32.totalorder %s22, 0
      %p91 = por %p89, %p90
      %s92 = ssub.s32 %s16, %s23
      %p93 = scmp.eq.s32.totalorder %s92, 0
      %s95 = sadd.s32 %s94, 1
      %s96 = scalar_select %p93, %s94, %s95
      %p99 = pneg %p93
      %p100 = scmp.eq.s32.totalorder %s16, 1
      %p101 = por %p99, %p100
      %p102 = scmp.ne.s32.totalorder %s94, %s97
      %p103 = scmp.eq.s32.totalorder %s16, 0
      %p104 = por %p102, %p103
      %p105 = scmp.ne.s32.totalorder %s94, %s97
      %p106 = scmp.eq.s32.totalorder %s21, 1
      %p107 = por %p105, %p106
      %p108 = scmp.ne.s32.totalorder %s97, %s98
      %p109 = scmp.eq.s32.totalorder %s21, 0
      %p110 = por %p108, %p109
      %p111 = scmp.ne.s32.totalorder %s97, %s98
      %p112 = scmp.eq.s32.totalorder %s22, 1
      %p113 = por %p111, %p112
      %p115 = scmp.ne.s32.totalorder %s98, %s114
      %p116 = scmp.eq.s32.totalorder %s22, 0
      %p117 = por %p115, %p116
      %p118 = scmp.le.s32.totalorder 1, %s16
      %p119 = scmp.lt.s32.totalorder %s16, 3
      %p120 = pnand %p118, %p119
      %p121 = pneg %p120
      // Predicated region
      $region9: #{tpu_custom_call.1} parent=5 // pred_check
        _
      $region10: #{tpu_custom_call.1} parent=5 // pred_check_branch
        %123 = sbr.rel (%p120) target = $region12
      $region11: #{tpu_custom_call.1} parent=5 // pred_region
        %s124 = ssub.s32 %s16, 1
        // Predicated region
        $region13: #{tpu_custom_call.1} parent=11 // pred_check
          %p125 = pneg %p63
        $region14: #{tpu_custom_call.1} parent=11 // pred_check_branch
          %127 = sbr.rel (%p125) target = $region16
        $region15: #{tpu_custom_call.1} parent=11 // pred_region
          %s129 = ssub.s32 1536, 1536
          %130 = vsyncadd [#allocation6], %s129
          %s131 = sshll.u32 [#allocation5], 4
          %s132 = int_to_ptr.vmem [resolvable:$true] %s131
          %137 = dma.hbm_to_vmem [thread:$0]  %s1, 1536, %s132, [#allocation6], 384, 384, 24
        $region16: #{tpu_custom_call.1} parent=11 // pred_fallthru
          _
        // Predicated region
        $region17: #{tpu_custom_call.1} parent=11 // pred_check
          %p138 = pneg %p84
        $region18: #{tpu_custom_call.1} parent=11 // pred_check_branch
          %140 = sbr.rel (%p138) target = $region20
        $region19: #{tpu_custom_call.1} parent=11 // pred_region
          _
        $region20: #{tpu_custom_call.1} parent=11 // pred_fallthru
          _
      $region12: #{tpu_custom_call.1} parent=5 // pred_fallthru
        _
      %p141 = scmp.lt.s32.totalorder %s16, 2
      // Predicated region
      $region21: #{tpu_custom_call.1} parent=5 // pred_check
        %p142 = pneg %p141
      $region22: #{tpu_custom_call.1} parent=5 // pred_check_branch
        %144 = sbr.rel (%p142) target = $region24
      $region23: #{tpu_custom_call.1} parent=5 // pred_region
        // Predicated region
        $region25: #{tpu_custom_call.1} parent=23 // pred_check
          %p145 = pneg %p36
        $region26: #{tpu_custom_call.1} parent=23 // pred_check_branch
          %147 = sbr.rel (%p145) target = $region28
        $region27: #{tpu_custom_call.1} parent=23 // pred_region
          %s148 = sand.u32 %s26, 1
          %s149 = scalar_lea.sflag [#allocation3], %s148
          %s150 = sand.u32 %s26, 1
          %s151 = smul.addr %s150, 64
          %s152 = scalar_lea.vmem [#allocation2], %s151
          %s153 = smul.u32 8, %s16
          %s155 = ssub.s32 1024, 1024
          %156 = vsyncadd %s149, %s155
          %s157 = smul.addr %s153, 128
          %s158 = scalar_lea.hbm %s0, %s157
          %s159 = sshll.u32 %s152, 4
          %s160 = int_to_ptr.vmem [resolvable:$true] %s159
          %165 = dma.hbm_to_vmem [thread:$0]  %s158, 1024, %s160, %s149, 128, 128, 8
        $region28: #{tpu_custom_call.1} parent=23 // pred_fallthru
          _
      $region24: #{tpu_custom_call.1} parent=5 // pred_fallthru
        _
      %p166 = scmp.le.s32.totalorder 1, %s16
      %p167 = scmp.lt.s32.totalorder %s16, 3
      %p168 = pnand %p166, %p167
      %p169 = pneg %p168
      // Predicated region
      $region29: #{tpu_custom_call.1} parent=5 // pred_check
        _
      $region30: #{tpu_custom_call.1} parent=5 // pred_check_branch
        %171 = sbr.rel (%p168) target = $region32
      $region31: #{tpu_custom_call.1} parent=5 // pred_region
        %s172 = ssub.s32 %s16, 1
        %s173 = sand.u32 %s29, 1
        %s174 = scalar_lea.sflag [#allocation3], %s173
        %s175 = sand.u32 %s29, 1
        %s176 = smul.addr %s175, 64
        %s177 = scalar_lea.vmem [#allocation2], %s176
        // Predicated region
        $region33: #{tpu_custom_call.1} parent=31 // pred_check
          %p178 = pneg %p42
        $region34: #{tpu_custom_call.1} parent=31 // pred_check_branch
          %180 = sbr.rel (%p178) target = $region36
        $region35: #{tpu_custom_call.1} parent=31 // pred_region
          %181 = dma.done %s174, 1024
        $region36: #{tpu_custom_call.1} parent=31 // pred_fallthru
          _
        // Predicated region
        $region37: #{tpu_custom_call.1} parent=31 // pred_check
          %p182 = pneg %p63
        $region38: #{tpu_custom_call.1} parent=31 // pred_check_branch
          %184 = sbr.rel (%p182) target = $region40
        $region39: #{tpu_custom_call.1} parent=31 // pred_region
          %185 = dma.done [#allocation6], 1536
        $region40: #{tpu_custom_call.1} parent=31 // pred_fallthru
          _
        %s186 = sand.u32 %s29, 1
        %s187 = scalar_lea.sflag [#allocation3], %s186
        %s188 = sand.u32 %s29, 1
        %s189 = smul.addr %s188, 64
        %s190 = scalar_lea.vmem [#allocation2], %s189
        %p191 = pneg %p42
        %p192 = pneg %p39
        %p193 = pneg %p63
        %p194 = pneg %p60
        %p195 = pneg %p84
        %p196 = pneg %p81
        %p197 = pneg %p110
        %p198 = pneg %p107
        %s199 = sand.u32 %s97, 1
        %s200 = scalar_lea.sflag [#allocation4], %s199
        %s201 = sand.u32 %s97, 1
        %s202 = smul.addr %s201, 8
        %s203 = scalar_lea.vmem [#allocation7], %s202
        %s204 = smul.u32 8, %s21
        %v205 = vld [vmem:[%s177] sm:$0xff]
        %v206 = vld [vmem:[%s177 + $0x8] sm:$0xff]
        %v207 = vld [vmem:[%s177 + $0x10] sm:$0xff]
        %v208 = vld [vmem:[%s177 + $0x18] sm:$0xff]
        %v209 = vld [vmem:[%s177 + $0x20] sm:$0xff]
        %v210 = vld [vmem:[%s177 + $0x28] sm:$0xff]
        %v211 = vld [vmem:[%s177 + $0x30] sm:$0xff]
        %v212 = vld [vmem:[%s177 + $0x38] sm:$0xff]
        %v213 = vld [vmem:[#allocation5] sm:$0xff]
        %v214 = vld [vmem:[#allocation5 + $0x8] sm:$0xff]
        %v215 = vld [vmem:[#allocation5 + $0x10] sm:$0xff]
        %v216 = vld [vmem:[#allocation5 + $0x18] sm:$0xff]
        %v217 = vld [vmem:[#allocation5 + $0x20] sm:$0xff]
        %v218 = vld [vmem:[#allocation5 + $0x28] sm:$0xff]
        %v219 = vld [vmem:[#allocation5 + $0x30] sm:$0xff]
        %v220 = vld [vmem:[#allocation5 + $0x38] sm:$0xff]
        %v221 = vld [vmem:[#allocation5 + $0x40] sm:$0xff]
        %v222 = vld [vmem:[#allocation5 + $0x48] sm:$0xff]
        %v223 = vld [vmem:[#allocation5 + $0x50] sm:$0xff]
        %v224 = vld [vmem:[#allocation5 + $0x58] sm:$0xff]
        %v225 = vld [vmem:[%s2] sm:$0x7]
        %v227 = vlaneseq
        %v228 = vshrl.u32 %v227, 7
        %v229 = vsub.s32 0, %v228
        %v230 = vrot.slane %v225, %v229
        %v231 = vlaneseq
        %v232 = vshrl.u32 %v231, 7
        %v233 = vsub.s32 1, %v232
        %v234 = vrot.slane %v225, %v233
        %v235 = vlaneseq
        %v236 = vshrl.u32 %v235, 7
        %v237 = vsub.s32 2, %v236
        %v238 = vrot.slane %v225, %v237
        %vm242 = vcmask 261120
        %v244 = vsel %vm242, %v205, 0
        %v247 = vsel %vm242, %v206, 0
        %v250 = vsel %vm242, %v207, 0
        %v253 = vsel %vm242, %v208, 0
        %v256 = vsel %vm242, %v209, 0
        %v259 = vsel %vm242, %v210, 0
        %v262 = vsel %vm242, %v211, 0
        %v265 = vsel %vm242, %v212, 0
        %267 = vmatprep.subr.mxu0 %v214
        %268 = vmatpush1.msra.mxu0 %v213
        %269 = vmatprep.subr.mxu0 %v217
        %270 = vmatpush1.msra.mxu0 %v216
        %271 = vmatprep.subr.mxu0 %v220
        %272 = vmatpush1.msra.mxu0 %v219
        %273 = vmatprep.subr.mxu0 %v223
        %274 = vmatpush1.msra.mxu0 %v222
        %275 = vmatprep.subr.mxu0 0.0
        %276 = vmatpush1.msra.mxu0 0.0
        %277 = vmatprep.subr.mxu0 0.0
        %278 = vmatpush1.msra.mxu0 0.0
        %279 = vmatprep.subr.mxu0 0.0
        %280 = vmatpush1.msra.mxu0 0.0
        %281 = vmatprep.subr.mxu0 0.0
        %282 = vmatpush1.msra.mxu0 0.0
        %283 = vmatprep.subr.mxu0 0.0
        %284 = vmatpush1.msra.mxu0 0.0
        %285 = vmatprep.subr.mxu0 0.0
        %286 = vmatpush1.msra.mxu0 0.0
        %287 = vmatprep.subr.mxu0 0.0
        %288 = vmatpush1.msra.mxu0 0.0
        %289 = vmatprep.subr.mxu0 0.0
        %290 = vmatpush1.msra.mxu0 0.0
        %291 = vmatprep.subr.mxu0 0.0
        %292 = vmatpush1.msra.mxu0 0.0
        %293 = vmatprep.subr.mxu0 0.0
        %294 = vmatpush1.msra.mxu0 0.0
        %295 = vmatprep.subr.mxu0 0.0
        %296 = vmatpush1.msra.mxu0 0.0
        %297 = vmatprep.subr.mxu0 0.0
        %298 = vmatpush1.msra.mxu0 0.0
        %299 = vmatprep.subr.mxu0 0.0
        %300 = vmatpush1.msra.mxu0 0.0
        %301 = vmatprep.subr.mxu0 0.0
        %302 = vmatpush1.msra.mxu0 0.0
        %303 = vmatprep.subr.mxu0 0.0
        %304 = vmatpush1.msra.mxu0 0.0
        %305 = vmatprep.subr.mxu0 0.0
        %306 = vmatpush1.msra.mxu0 0.0
        %307 = vmatprep.subr.mxu0 0.0
        %308 = vmatpush1.msra.mxu0 0.0
        %309 = vmatprep.subr.mxu0 0.0
        %310 = vmatpush1.msra.mxu0 0.0
        %311 = vmatprep.subr.mxu0 0.0
        %312 = vmatpush1.msra.mxu0 0.0
        %313 = vmatprep.subr.mxu0 0.0
        %314 = vmatpush1.msra.mxu0 0.0
        %315 = vmatprep.subr.mxu0 0.0
        %316 = vmatpush1.msra.mxu0 0.0
        %317 = vmatprep.subr.mxu0 0.0
        %318 = vmatpush1.msra.mxu0 0.0
        %319 = vmatprep.subr.mxu0 0.0
        %320 = vmatpush1.msra.mxu0 0.0
        %321 = vmatprep.subr.mxu0 0.0
        %322 = vmatpush1.msra.mxu0 0.0
        %323 = vmatprep.subr.mxu0 0.0
        %324 = vmatpush1.msra.mxu0 0.0
        %325 = vmatprep.subr.mxu0 0.0
        %326 = vmatpush1.msra.mxu0 0.0
        %327 = vmatprep.subr.mxu0 0.0
        %328 = vmatpush1.msra.mxu0 0.0
        %329 = vmatprep.subr.mxu0 0.0
        %330 = vmatpush1.msra.mxu0 0.0
        %331 = vmatprep.mubr.f32.mxu0 0.0
        %332 = vmatmul.mubr.f32.gmra.mrb[0].mxu0 %v244
        %v333 = vpop.f32.mrb[0].mxu0
        %v334 = vadd.f32 %v230, %v333
        %v335 = vpop.f32.mrb[0].mxu0
        %v336 = vadd.f32 %v234, %v335
        %337 = vmatprep.mubr.f32.mxu0 0.0
        %338 = vmatmul.mubr.f32.gmra.mrb[0].mxu0 %v247
        %v339 = vpop.f32.mrb[0].mxu0
        %v340 = vadd.f32 %v230, %v339
        %v341 = vpop.f32.mrb[0].mxu0
        %v342 = vadd.f32 %v234, %v341
        %343 = vmatprep.mubr.f32.mxu0 0.0
        %344 = vmatmul.mubr.f32.gmra.mrb[0].mxu0 %v250
        %v345 = vpop.f32.mrb[0].mxu0
        %v346 = vadd.f32 %v230, %v345
        %v347 = vpop.f32.mrb[0].mxu0
        %v348 = vadd.f32 %v234, %v347
        %349 = vmatprep.mubr.f32.mxu0 0.0
        %350 = vmatmul.mubr.f32.gmra.mrb[0].mxu0 %v253
        %v351 = vpop.f32.mrb[0].mxu0
        %v352 = vadd.f32 %v230, %v351
        %v353 = vpop.f32.mrb[0].mxu0
        %v354 = vadd.f32 %v234, %v353
        %355 = vmatprep.mubr.f32.mxu0 0.0
        %356 = vmatmul.mubr.f32.gmra.mrb[0].mxu0 %v256
        %v357 = vpop.f32.mrb[0].mxu0
        %v358 = vadd.f32 %v230, %v357
        %v359 = vpop.f32.mrb[0].mxu0
        %v360 = vadd.f32 %v234, %v359
        %361 = vmatprep.mubr.f32.mxu0 0.0
        %362 = vmatmul.mubr.f32.gmra.mrb[0].mxu0 %v259
        %v363 = vpop.f32.mrb[0].mxu0
        %v364 = vadd.f32 %v230, %v363
        %v365 = vpop.f32.mrb[0].mxu0
        %v366 = vadd.f32 %v234, %v365
        %367 = vmatprep.mubr.f32.mxu0 0.0
        %368 = vmatmul.mubr.f32.gmra.mrb[0].mxu0 %v262
        %v369 = vpop.f32.mrb[0].mxu0
        %v370 = vadd.f32 %v230, %v369
        %v371 = vpop.f32.mrb[0].mxu0
        %v372 = vadd.f32 %v234, %v371
        %373 = vmatprep.mubr.f32.mxu0 0.0
        %374 = vmatmul.mubr.f32.gmra.mrb[0].mxu0 %v265
        %v375 = vpop.f32.mrb[0].mxu0
        %v376 = vadd.f32 %v230, %v375
        %v377 = vpop.f32.mrb[0].mxu0
        %v378 = vadd.f32 %v234, %v377
        %379 = vdwg.mxu0
        %380 = vmatprep.subr.mxu0 0.0
        %381 = vmatpush1.msra.mxu0 %v215
        %382 = vmatprep.subr.mxu0 0.0
        %383 = vmatpush1.msra.mxu0 %v218
        %384 = vmatprep.subr.mxu0 0.0
        %385 = vmatpush1.msra.mxu0 %v221
        %386 = vmatprep.subr.mxu0 0.0
        %387 = vmatpush1.msra.mxu0 %v224
        %388 = vmatprep.subr.mxu0 0.0
        %389 = vmatpush1.msra.mxu0 0.0
        %390 = vmatprep.subr.mxu0 0.0
        %391 = vmatpush1.msra.mxu0 0.0
        %392 = vmatprep.subr.mxu0 0.0
        %393 = vmatpush1.msra.mxu0 0.0
        %394 = vmatprep.subr.mxu0 0.0
        %395 = vmatpush1.msra.mxu0 0.0
        %396 = vmatprep.subr.mxu0 0.0
        %397 = vmatpush1.msra.mxu0 0.0
        %398 = vmatprep.subr.mxu0 0.0
        %399 = vmatpush1.msra.mxu0 0.0
        %400 = vmatprep.subr.mxu0 0.0
        %401 = vmatpush1.msra.mxu0 0.0
        %402 = vmatprep.subr.mxu0 0.0
        %403 = vmatpush1.msra.mxu0 0.0
        %404 = vmatprep.subr.mxu0 0.0
        %405 = vmatpush1.msra.mxu0 0.0
        %406 = vmatprep.subr.mxu0 0.0
        %407 = vmatpush1.msra.mxu0 0.0
        %408 = vmatprep.subr.mxu0 0.0
        %409 = vmatpush1.msra.mxu0 0.0
        %410 = vmatprep.subr.mxu0 0.0
        %411 = vmatpush1.msra.mxu0 0.0
        %412 = vmatprep.subr.mxu0 0.0
        %413 = vmatpush1.msra.mxu0 0.0
        %414 = vmatprep.subr.mxu0 0.0
        %415 = vmatpush1.msra.mxu0 0.0
        %416 = vmatprep.subr.mxu0 0.0
        %417 = vmatpush1.msra.mxu0 0.0
        %418 = vmatprep.subr.mxu0 0.0
        %419 = vmatpush1.msra.mxu0 0.0
        %420 = vmatprep.subr.mxu0 0.0
        %421 = vmatpush1.msra.mxu0 0.0
        %422 = vmatprep.subr.mxu0 0.0
        %423 = vmatpush1.msra.mxu0 0.0
        %424 = vmatprep.subr.mxu0 0.0
        %425 = vmatpush1.msra.mxu0 0.0
        %426 = vmatprep.subr.mxu0 0.0
        %427 = vmatpush1.msra.mxu0 0.0
        %428 = vmatprep.subr.mxu0 0.0
        %429 = vmatpush1.msra.mxu0 0.0
        %430 = vmatprep.subr.mxu0 0.0
        %431 = vmatpush1.msra.mxu0 0.0
        %432 = vmatprep.subr.mxu0 0.0
        %433 = vmatpush1.msra.mxu0 0.0
        %434 = vmatprep.subr.mxu0 0.0
        %435 = vmatpush1.msra.mxu0 0.0
        %436 = vmatprep.subr.mxu0 0.0
        %437 = vmatpush1.msra.mxu0 0.0
        %438 = vmatprep.subr.mxu0 0.0
        %439 = vmatpush1.msra.mxu0 0.0
        %440 = vmatprep.subr.mxu0 0.0
        %441 = vmatpush1.msra.mxu0 0.0
        %442 = vmatprep.subr.mxu0 0.0
        %443 = vmatpush1.msra.mxu0 0.0
        %444 = vmatprep.mubr.f32.mxu0 0.0
        %445 = vmatmul.mubr.f32.gmra.mrb[0].mxu0 %v244
        %v446 = vpop.f32.mrb[0].mxu0
        %v447 = vadd.f32 %v238, %v446
        %v448 = vpop.f32.mrb[0].mxu0
        %449 = vmatprep.mubr.f32.mxu0 0.0
        %450 = vmatmul.mubr.f32.gmra.mrb[0].mxu0 %v247
        %v451 = vpop.f32.mrb[0].mxu0
        %v452 = vadd.f32 %v238, %v451
        %v453 = vpop.f32.mrb[0].mxu0
        %454 = vmatprep.mubr.f32.mxu0 0.0
        %455 = vmatmul.mubr.f32.gmra.mrb[0].mxu0 %v250
        %v456 = vpop.f32.mrb[0].mxu0
        %v457 = vadd.f32 %v238, %v456
        %v458 = vpop.f32.mrb[0].mxu0
        %459 = vmatprep.mubr.f32.mxu0 0.0
        %460 = vmatmul.mubr.f32.gmra.mrb[0].mxu0 %v253
        %v461 = vpop.f32.mrb[0].mxu0
        %v462 = vadd.f32 %v238, %v461
        %v463 = vpop.f32.mrb[0].mxu0
        %464 = vmatprep.mubr.f32.mxu0 0.0
        %465 = vmatmul.mubr.f32.gmra.mrb[0].mxu0 %v256
        %v466 = vpop.f32.mrb[0].mxu0
        %v467 = vadd.f32 %v238, %v466
        %v468 = vpop.f32.mrb[0].mxu0
        %469 = vmatprep.mubr.f32.mxu0 0.0
        %470 = vmatmul.mubr.f32.gmra.mrb[0].mxu0 %v259
        %v471 = vpop.f32.mrb[0].mxu0
        %v472 = vadd.f32 %v238, %v471
        %v473 = vpop.f32.mrb[0].mxu0
        %474 = vmatprep.mubr.f32.mxu0 0.0
        %475 = vmatmul.mubr.f32.gmra.mrb[0].mxu0 %v262
        %v476 = vpop.f32.mrb[0].mxu0
        %v477 = vadd.f32 %v238, %v476
        %v478 = vpop.f32.mrb[0].mxu0
        %479 = vmatprep.mubr.f32.mxu0 0.0
        %480 = vmatmul.mubr.f32.gmra.mrb[0].mxu0 %v265
        %v481 = vpop.f32.mrb[0].mxu0
        %v482 = vadd.f32 %v238, %v481
        %v483 = vpop.f32.mrb[0].mxu0
        %484 = vdwg.mxu0
        %v485 = vmul.f32 %v334, %v336
        %v486 = vmul.f32 %v340, %v342
        %v487 = vmul.f32 %v346, %v348
        %v488 = vmul.f32 %v352, %v354
        %v489 = vmul.f32 %v358, %v360
        %v490 = vmul.f32 %v364, %v366
        %v491 = vmul.f32 %v370, %v372
        %v492 = vmul.f32 %v376, %v378
        %493 = vadd.xlane.f32.xlu0 %v485
        %v494 = vpop.xlane.xlu0 %493
        %495 = vadd.xlane.f32.xlu0 %v486
        %v496 = vpop.xlane.xlu0 %495
        %497 = vadd.xlane.f32.xlu0 %v487
        %v498 = vpop.xlane.xlu0 %497
        %499 = vadd.xlane.f32.xlu0 %v488
        %v500 = vpop.xlane.xlu0 %499
        %501 = vadd.xlane.f32.xlu0 %v489
        %v502 = vpop.xlane.xlu0 %501
        %503 = vadd.xlane.f32.xlu0 %v490
        %v504 = vpop.xlane.xlu0 %503
        %505 = vadd.xlane.f32.xlu0 %v491
        %v506 = vpop.xlane.xlu0 %505
        %507 = vadd.xlane.f32.xlu0 %v492
        %v508 = vpop.xlane.xlu0 %507
        %v517 = vlaneseq
        %v518 = vand.u32 %v517, 127
        %v519 = vlaneseq
        %v520 = vshrl.u32 %v519, 7
        %v521 = vsub.s32 %v518, %v520
        %v522 = vrot.slane %v494, %v521
        %v523 = vlaneseq
        %v524 = vshrl.u32 %v523, 7
        %v525 = vsub.s32 %v518, %v524
        %v526 = vrot.slane %v496, %v525
        %v527 = vlaneseq
        %v528 = vshrl.u32 %v527, 7
        %v529 = vsub.s32 %v518, %v528
        %v530 = vrot.slane %v498, %v529
        %v531 = vlaneseq
        %v532 = vshrl.u32 %v531, 7
        %v533 = vsub.s32 %v518, %v532
        %v534 = vrot.slane %v500, %v533
        %v535 = vlaneseq
        %v536 = vshrl.u32 %v535, 7
        %v537 = vsub.s32 %v518, %v536
        %v538 = vrot.slane %v502, %v537
        %v539 = vlaneseq
        %v540 = vshrl.u32 %v539, 7
        %v541 = vsub.s32 %v518, %v540
        %v542 = vrot.slane %v504, %v541
        %v543 = vlaneseq
        %v544 = vshrl.u32 %v543, 7
        %v545 = vsub.s32 %v518, %v544
        %v546 = vrot.slane %v506, %v545
        %v547 = vlaneseq
        %v548 = vshrl.u32 %v547, 7
        %v549 = vsub.s32 %v518, %v548
        %v550 = vrot.slane %v508, %v549
        %vm551 = vcmask 1041409
        %v552 = vsel %vm551, %v526, %v522
        %vm553 = vcmask 1042434
        %v554 = vsel %vm553, %v530, %v552
        %vm555 = vcmask 1043459
        %v556 = vsel %vm555, %v534, %v554
        %vm557 = vcmask 1044484
        %v558 = vsel %vm557, %v538, %v556
        %vm559 = vcmask 1045509
        %v560 = vsel %vm559, %v542, %v558
        %vm561 = vcmask 1046534
        %v562 = vsel %vm561, %v546, %v560
        %vm563 = vcmask 1047559
        %v564 = vsel %vm563, %v550, %v562
        %vm566 = vcmask 64512
        %v567 = vsel %vm566, %v564, -inf
        %568 = vmax.xlane.f32.xlu0 %v567
        %v569 = vpop.xlane.xlu0 %568
        %v571 = vlaneseq
        %v572 = vshrl.u32 %v571, 7
        %v573 = vsub.s32 0, %v572
        %v574 = vrot.slane %v569, %v573
        %v575 = vlaneseq
        %v576 = vshrl.u32 %v575, 7
        %v577 = vsub.s32 1, %v576
        %v578 = vrot.slane %v569, %v577
        %v579 = vlaneseq
        %v580 = vshrl.u32 %v579, 7
        %v581 = vsub.s32 2, %v580
        %v582 = vrot.slane %v569, %v581
        %v583 = vlaneseq
        %v584 = vshrl.u32 %v583, 7
        %v585 = vsub.s32 3, %v584
        %v586 = vrot.slane %v569, %v585
        %v587 = vlaneseq
        %v588 = vshrl.u32 %v587, 7
        %v589 = vsub.s32 4, %v588
        %v590 = vrot.slane %v569, %v589
        %v591 = vlaneseq
        %v592 = vshrl.u32 %v591, 7
        %v593 = vsub.s32 5, %v592
        %v594 = vrot.slane %v569, %v593
        %v595 = vlaneseq
        %v596 = vshrl.u32 %v595, 7
        %v597 = vsub.s32 6, %v596
        %v598 = vrot.slane %v569, %v597
        %v599 = vlaneseq
        %v600 = vshrl.u32 %v599, 7
        %v601 = vsub.s32 7, %v600
        %v602 = vrot.slane %v569, %v601
        %v611 = vsub.f32 %v494, %v574
        %v612 = vsub.f32 %v496, %v578
        %v613 = vsub.f32 %v498, %v582
        %v614 = vsub.f32 %v500, %v586
        %v615 = vsub.f32 %v502, %v590
        %v616 = vsub.f32 %v504, %v594
        %v617 = vsub.f32 %v506, %v598
        %v618 = vsub.f32 %v508, %v602
        %v619 = vmul.f32 %v611, 1.442695
        %v620 = vpow.pop %v619
        %v621 = vmul.f32 %v612, 1.442695
        %v622 = vpow.pop %v621
        %v623 = vmul.f32 %v613, 1.442695
        %v624 = vpow.pop %v623
        %v625 = vmul.f32 %v614, 1.442695
        %v626 = vpow.pop %v625
        %v627 = vmul.f32 %v615, 1.442695
        %v628 = vpow.pop %v627
        %v629 = vmul.f32 %v616, 1.442695
        %v630 = vpow.pop %v629
        %v631 = vmul.f32 %v617, 1.442695
        %v632 = vpow.pop %v631
        %v633 = vmul.f32 %v618, 1.442695
        %v634 = vpow.pop %v633
        %643 = vset.pattern.permute.xlu0 0
        %644 = vperm.xlu0 %643, %v620
        %v645 = vpop.permute.xlu0 %644
        %646 = vset.pattern.permute.xlu0 0
        %647 = vperm.xlu0 %646, %v622
        %v648 = vpop.permute.xlu0 %647
        %649 = vset.pattern.permute.xlu0 0
        %650 = vperm.xlu0 %649, %v624
        %v651 = vpop.permute.xlu0 %650
        %652 = vset.pattern.permute.xlu0 0
        %653 = vperm.xlu0 %652, %v626
        %v654 = vpop.permute.xlu0 %653
        %655 = vset.pattern.permute.xlu0 0
        %656 = vperm.xlu0 %655, %v628
        %v657 = vpop.permute.xlu0 %656
        %658 = vset.pattern.permute.xlu0 0
        %659 = vperm.xlu0 %658, %v630
        %v660 = vpop.permute.xlu0 %659
        %661 = vset.pattern.permute.xlu0 0
        %662 = vperm.xlu0 %661, %v632
        %v663 = vpop.permute.xlu0 %662
        %664 = vset.pattern.permute.xlu0 0
        %665 = vperm.xlu0 %664, %v634
        %v666 = vpop.permute.xlu0 %665
        %v667 = vlaneseq
        %v668 = vshrl.u32 %v667, 7
        %v669 = vsub.s32 %v518, %v668
        %v670 = vrot.slane %v645, %v669
        %v671 = vlaneseq
        %v672 = vshrl.u32 %v671, 7
        %v673 = vsub.s32 %v518, %v672
        %v674 = vrot.slane %v648, %v673
        %v675 = vlaneseq
        %v676 = vshrl.u32 %v675, 7
        %v677 = vsub.s32 %v518, %v676
        %v678 = vrot.slane %v651, %v677
        %v679 = vlaneseq
        %v680 = vshrl.u32 %v679, 7
        %v681 = vsub.s32 %v518, %v680
        %v682 = vrot.slane %v654, %v681
        %v683 = vlaneseq
        %v684 = vshrl.u32 %v683, 7
        %v685 = vsub.s32 %v518, %v684
        %v686 = vrot.slane %v657, %v685
        %v687 = vlaneseq
        %v688 = vshrl.u32 %v687, 7
        %v689 = vsub.s32 %v518, %v688
        %v690 = vrot.slane %v660, %v689
        %v691 = vlaneseq
        %v692 = vshrl.u32 %v691, 7
        %v693 = vsub.s32 %v518, %v692
        %v694 = vrot.slane %v663, %v693
        %v695 = vlaneseq
        %v696 = vshrl.u32 %v695, 7
        %v697 = vsub.s32 %v518, %v696
        %v698 = vrot.slane %v666, %v697
        %v699 = vsel %vm551, %v674, %v670
        %v700 = vsel %vm553, %v678, %v699
        %v701 = vsel %vm555, %v682, %v700
        %v702 = vsel %vm557, %v686, %v701
        %v703 = vsel %vm559, %v690, %v702
        %v704 = vsel %vm561, %v694, %v703
        %v705 = vsel %vm563, %v698, %v704
        %v707 = vsel %vm566, %v705, 0.0
        %708 = vadd.xlane.f32.xlu0 %v707
        %v709 = vpop.xlane.xlu0 %708
        %v710 = vsel %vm566, %v670, 0
        %712 = vmatprep.subr.mxu0 0.0
        %713 = vmatpush1.msra.mxu0 %v447
        %714 = vmatprep.subr.mxu0 0.0
        %715 = vmatpush1.msra.mxu0 0.0
        %716 = vmatprep.subr.mxu0 0.0
        %717 = vmatpush1.msra.mxu0 0.0
        %718 = vmatprep.subr.mxu0 0.0
        %719 = vmatpush1.msra.mxu0 0.0
        %720 = vmatprep.subr.mxu0 0.0
        %721 = vmatpush1.msra.mxu0 0.0
        %722 = vmatprep.subr.mxu0 0.0
        %723 = vmatpush1.msra.mxu0 0.0
        %724 = vmatprep.subr.mxu0 0.0
        %725 = vmatpush1.msra.mxu0 0.0
        %726 = vmatprep.subr.mxu0 0.0
        %727 = vmatpush1.msra.mxu0 0.0
        %728 = vmatprep.subr.mxu0 0.0
        %729 = vmatpush1.msra.mxu0 0.0
        %730 = vmatprep.subr.mxu0 0.0
        %731 = vmatpush1.msra.mxu0 0.0
        %732 = vmatprep.subr.mxu0 0.0
        %733 = vmatpush1.msra.mxu0 0.0
        %734 = vmatprep.subr.mxu0 0.0
        %735 = vmatpush1.msra.mxu0 0.0
        %736 = vmatprep.subr.mxu0 0.0
        %737 = vmatpush1.msra.mxu0 0.0
        %738 = vmatprep.subr.mxu0 0.0
        %739 = vmatpush1.msra.mxu0 0.0
        %740 = vmatprep.subr.mxu0 0.0
        %741 = vmatpush1.msra.mxu0 0.0
        %742 = vmatprep.subr.mxu0 0.0
        %743 = vmatpush1.msra.mxu0 0.0
        %744 = vmatprep.subr.mxu0 0.0
        %745 = vmatpush1.msra.mxu0 0.0
        %746 = vmatprep.subr.mxu0 0.0
        %747 = vmatpush1.msra.mxu0 0.0
        %748 = vmatprep.subr.mxu0 0.0
        %749 = vmatpush1.msra.mxu0 0.0
        %750 = vmatprep.subr.mxu0 0.0
        %751 = vmatpush1.msra.mxu0 0.0
        %752 = vmatprep.subr.mxu0 0.0
        %753 = vmatpush1.msra.mxu0 0.0
        %754 = vmatprep.subr.mxu0 0.0
        %755 = vmatpush1.msra.mxu0 0.0
        %756 = vmatprep.subr.mxu0 0.0
        %757 = vmatpush1.msra.mxu0 0.0
        %758 = vmatprep.subr.mxu0 0.0
        %759 = vmatpush1.msra.mxu0 0.0
        %760 = vmatprep.subr.mxu0 0.0
        %761 = vmatpush1.msra.mxu0 0.0
        %762 = vmatprep.subr.mxu0 0.0
        %763 = vmatpush1.msra.mxu0 0.0
        %764 = vmatprep.subr.mxu0 0.0
        %765 = vmatpush1.msra.mxu0 0.0
        %766 = vmatprep.subr.mxu0 0.0
        %767 = vmatpush1.msra.mxu0 0.0
        %768 = vmatprep.subr.mxu0 0.0
        %769 = vmatpush1.msra.mxu0 0.0
        %770 = vmatprep.subr.mxu0 0.0
        %771 = vmatpush1.msra.mxu0 0.0
        %772 = vmatprep.subr.mxu0 0.0
        %773 = vmatpush1.msra.mxu0 0.0
        %774 = vmatprep.subr.mxu0 0.0
        %775 = vmatpush1.msra.mxu0 0.0
        %776 = vmatprep.mubr.f32.mxu0 0.0
        %777 = vmatmul.mubr.f32.gmra.mrb[0].mxu0 %v710
        %v778 = vpop.f32.mrb[0].mxu0
        %v779 = vadd.f32 0.0, %v778
        %v780 = vpop.f32.mrb[0].mxu0
        %781 = vdwg.mxu0
        %v782 = vsel %vm566, %v674, 0
        %784 = vmatprep.subr.mxu0 0.0
        %785 = vmatpush1.msra.mxu0 %v452
        %786 = vmatprep.subr.mxu0 0.0
        %787 = vmatpush1.msra.mxu0 0.0
        %788 = vmatprep.subr.mxu0 0.0
        %789 = vmatpush1.msra.mxu0 0.0
        %790 = vmatprep.subr.mxu0 0.0
        %791 = vmatpush1.msra.mxu0 0.0
        %792 = vmatprep.subr.mxu0 0.0
        %793 = vmatpush1.msra.mxu0 0.0
        %794 = vmatprep.subr.mxu0 0.0
        %795 = vmatpush1.msra.mxu0 0.0
        %796 = vmatprep.subr.mxu0 0.0
        %797 = vmatpush1.msra.mxu0 0.0
        %798 = vmatprep.subr.mxu0 0.0
        %799 = vmatpush1.msra.mxu0 0.0
        %800 = vmatprep.subr.mxu0 0.0
        %801 = vmatpush1.msra.mxu0 0.0
        %802 = vmatprep.subr.mxu0 0.0
        %803 = vmatpush1.msra.mxu0 0.0
        %804 = vmatprep.subr.mxu0 0.0
        %805 = vmatpush1.msra.mxu0 0.0
        %806 = vmatprep.subr.mxu0 0.0
        %807 = vmatpush1.msra.mxu0 0.0
        %808 = vmatprep.subr.mxu0 0.0
        %809 = vmatpush1.msra.mxu0 0.0
        %810 = vmatprep.subr.mxu0 0.0
        %811 = vmatpush1.msra.mxu0 0.0
        %812 = vmatprep.subr.mxu0 0.0
        %813 = vmatpush1.msra.mxu0 0.0
        %814 = vmatprep.subr.mxu0 0.0
        %815 = vmatpush1.msra.mxu0 0.0
        %816 = vmatprep.subr.mxu0 0.0
        %817 = vmatpush1.msra.mxu0 0.0
        %818 = vmatprep.subr.mxu0 0.0
        %819 = vmatpush1.msra.mxu0 0.0
        %820 = vmatprep.subr.mxu0 0.0
        %821 = vmatpush1.msra.mxu0 0.0
        %822 = vmatprep.subr.mxu0 0.0
        %823 = vmatpush1.msra.mxu0 0.0
        %824 = vmatprep.subr.mxu0 0.0
        %825 = vmatpush1.msra.mxu0 0.0
        %826 = vmatprep.subr.mxu0 0.0
        %827 = vmatpush1.msra.mxu0 0.0
        %828 = vmatprep.subr.mxu0 0.0
        %829 = vmatpush1.msra.mxu0 0.0
        %830 = vmatprep.subr.mxu0 0.0
        %831 = vmatpush1.msra.mxu0 0.0
        %832 = vmatprep.subr.mxu0 0.0
        %833 = vmatpush1.msra.mxu0 0.0
        %834 = vmatprep.subr.mxu0 0.0
        %835 = vmatpush1.msra.mxu0 0.0
        %836 = vmatprep.subr.mxu0 0.0
        %837 = vmatpush1.msra.mxu0 0.0
        %838 = vmatprep.subr.mxu0 0.0
        %839 = vmatpush1.msra.mxu0 0.0
        %840 = vmatprep.subr.mxu0 0.0
        %841 = vmatpush1.msra.mxu0 0.0
        %842 = vmatprep.subr.mxu0 0.0
        %843 = vmatpush1.msra.mxu0 0.0
        %844 = vmatprep.subr.mxu0 0.0
        %845 = vmatpush1.msra.mxu0 0.0
        %846 = vmatprep.subr.mxu0 0.0
        %847 = vmatpush1.msra.mxu0 0.0
        %848 = vmatprep.mubr.f32.mxu0 0.0
        %849 = vmatmul.mubr.f32.gmra.mrb[0].mxu0 %v782
        %v850 = vpop.f32.mrb[0].mxu0
        %v851 = vadd.f32 0.0, %v850
        %v852 = vpop.f32.mrb[0].mxu0
        %853 = vdwg.mxu0
        %v854 = vsel %vm566, %v678, 0
        %856 = vmatprep.subr.mxu0 0.0
        %857 = vmatpush1.msra.mxu0 %v457
        %858 = vmatprep.subr.mxu0 0.0
        %859 = vmatpush1.msra.mxu0 0.0
        %860 = vmatprep.subr.mxu0 0.0
        %861 = vmatpush1.msra.mxu0 0.0
        %862 = vmatprep.subr.mxu0 0.0
        %863 = vmatpush1.msra.mxu0 0.0
        %864 = vmatprep.subr.mxu0 0.0
        %865 = vmatpush1.msra.mxu0 0.0
        %866 = vmatprep.subr.mxu0 0.0
        %867 = vmatpush1.msra.mxu0 0.0
        %868 = vmatprep.subr.mxu0 0.0
        %869 = vmatpush1.msra.mxu0 0.0
        %870 = vmatprep.subr.mxu0 0.0
        %871 = vmatpush1.msra.mxu0 0.0
        %872 = vmatprep.subr.mxu0 0.0
        %873 = vmatpush1.msra.mxu0 0.0
        %874 = vmatprep.subr.mxu0 0.0
        %875 = vmatpush1.msra.mxu0 0.0
        %876 = vmatprep.subr.mxu0 0.0
        %877 = vmatpush1.msra.mxu0 0.0
        %878 = vmatprep.subr.mxu0 0.0
        %879 = vmatpush1.msra.mxu0 0.0
        %880 = vmatprep.subr.mxu0 0.0
        %881 = vmatpush1.msra.mxu0 0.0
        %882 = vmatprep.subr.mxu0 0.0
        %883 = vmatpush1.msra.mxu0 0.0
        %884 = vmatprep.subr.mxu0 0.0
        %885 = vmatpush1.msra.mxu0 0.0
        %886 = vmatprep.subr.mxu0 0.0
        %887 = vmatpush1.msra.mxu0 0.0
        %888 = vmatprep.subr.mxu0 0.0
        %889 = vmatpush1.msra.mxu0 0.0
        %890 = vmatprep.subr.mxu0 0.0
        %891 = vmatpush1.msra.mxu0 0.0
        %892 = vmatprep.subr.mxu0 0.0
        %893 = vmatpush1.msra.mxu0 0.0
        %894 = vmatprep.subr.mxu0 0.0
        %895 = vmatpush1.msra.mxu0 0.0
        %896 = vmatprep.subr.mxu0 0.0
        %897 = vmatpush1.msra.mxu0 0.0
        %898 = vmatprep.subr.mxu0 0.0
        %899 = vmatpush1.msra.mxu0 0.0
        %900 = vmatprep.subr.mxu0 0.0
        %901 = vmatpush1.msra.mxu0 0.0
        %902 = vmatprep.subr.mxu0 0.0
        %903 = vmatpush1.msra.mxu0 0.0
        %904 = vmatprep.subr.mxu0 0.0
        %905 = vmatpush1.msra.mxu0 0.0
        %906 = vmatprep.subr.mxu0 0.0
        %907 = vmatpush1.msra.mxu0 0.0
        %908 = vmatprep.subr.mxu0 0.0
        %909 = vmatpush1.msra.mxu0 0.0
        %910 = vmatprep.subr.mxu0 0.0
        %911 = vmatpush1.msra.mxu0 0.0
        %912 = vmatprep.subr.mxu0 0.0
        %913 = vmatpush1.msra.mxu0 0.0
        %914 = vmatprep.subr.mxu0 0.0
        %915 = vmatpush1.msra.mxu0 0.0
        %916 = vmatprep.subr.mxu0 0.0
        %917 = vmatpush1.msra.mxu0 0.0
        %918 = vmatprep.subr.mxu0 0.0
        %919 = vmatpush1.msra.mxu0 0.0
        %920 = vmatprep.mubr.f32.mxu0 0.0
        %921 = vmatmul.mubr.f32.gmra.mrb[0].mxu0 %v854
        %v922 = vpop.f32.mrb[0].mxu0
        %v923 = vadd.f32 0.0, %v922
        %v924 = vpop.f32.mrb[0].mxu0
        %925 = vdwg.mxu0
        %v926 = vsel %vm566, %v682, 0
        %928 = vmatprep.subr.mxu0 0.0
        %929 = vmatpush1.msra.mxu0 %v462
        %930 = vmatprep.subr.mxu0 0.0
        %931 = vmatpush1.msra.mxu0 0.0
        %932 = vmatprep.subr.mxu0 0.0
        %933 = vmatpush1.msra.mxu0 0.0
        %934 = vmatprep.subr.mxu0 0.0
        %935 = vmatpush1.msra.mxu0 0.0
        %936 = vmatprep.subr.mxu0 0.0
        %937 = vmatpush1.msra.mxu0 0.0
        %938 = vmatprep.subr.mxu0 0.0
        %939 = vmatpush1.msra.mxu0 0.0
        %940 = vmatprep.subr.mxu0 0.0
        %941 = vmatpush1.msra.mxu0 0.0
        %942 = vmatprep.subr.mxu0 0.0
        %943 = vmatpush1.msra.mxu0 0.0
        %944 = vmatprep.subr.mxu0 0.0
        %945 = vmatpush1.msra.mxu0 0.0
        %946 = vmatprep.subr.mxu0 0.0
        %947 = vmatpush1.msra.mxu0 0.0
        %948 = vmatprep.subr.mxu0 0.0
        %949 = vmatpush1.msra.mxu0 0.0
        %950 = vmatprep.subr.mxu0 0.0
        %951 = vmatpush1.msra.mxu0 0.0
        %952 = vmatprep.subr.mxu0 0.0
        %953 = vmatpush1.msra.mxu0 0.0
        %954 = vmatprep.subr.mxu0 0.0
        %955 = vmatpush1.msra.mxu0 0.0
        %956 = vmatprep.subr.mxu0 0.0
        %957 = vmatpush1.msra.mxu0 0.0
        %958 = vmatprep.subr.mxu0 0.0
        %959 = vmatpush1.msra.mxu0 0.0
        %960 = vmatprep.subr.mxu0 0.0
        %961 = vmatpush1.msra.mxu0 0.0
        %962 = vmatprep.subr.mxu0 0.0
        %963 = vmatpush1.msra.mxu0 0.0
        %964 = vmatprep.subr.mxu0 0.0
        %965 = vmatpush1.msra.mxu0 0.0
        %966 = vmatprep.subr.mxu0 0.0
        %967 = vmatpush1.msra.mxu0 0.0
        %968 = vmatprep.subr.mxu0 0.0
        %969 = vmatpush1.msra.mxu0 0.0
        %970 = vmatprep.subr.mxu0 0.0
        %971 = vmatpush1.msra.mxu0 0.0
        %972 = vmatprep.subr.mxu0 0.0
        %973 = vmatpush1.msra.mxu0 0.0
        %974 = vmatprep.subr.mxu0 0.0
        %975 = vmatpush1.msra.mxu0 0.0
        %976 = vmatprep.subr.mxu0 0.0
        %977 = vmatpush1.msra.mxu0 0.0
        %978 = vmatprep.subr.mxu0 0.0
        %979 = vmatpush1.msra.mxu0 0.0
        %980 = vmatprep.subr.mxu0 0.0
        %981 = vmatpush1.msra.mxu0 0.0
        %982 = vmatprep.subr.mxu0 0.0
        %983 = vmatpush1.msra.mxu0 0.0
        %984 = vmatprep.subr.mxu0 0.0
        %985 = vmatpush1.msra.mxu0 0.0
        %986 = vmatprep.subr.mxu0 0.0
        %987 = vmatpush1.msra.mxu0 0.0
        %988 = vmatprep.subr.mxu0 0.0
        %989 = vmatpush1.msra.mxu0 0.0
        %990 = vmatprep.subr.mxu0 0.0
        %991 = vmatpush1.msra.mxu0 0.0
        %992 = vmatprep.mubr.f32.mxu0 0.0
        %993 = vmatmul.mubr.f32.gmra.mrb[0].mxu0 %v926
        %v994 = vpop.f32.mrb[0].mxu0
        %v995 = vadd.f32 0.0, %v994
        %v996 = vpop.f32.mrb[0].mxu0
        %997 = vdwg.mxu0
        %v998 = vsel %vm566, %v686, 0
        %1000 = vmatprep.subr.mxu0 0.0
        %1001 = vmatpush1.msra.mxu0 %v467
        %1002 = vmatprep.subr.mxu0 0.0
        %1003 = vmatpush1.msra.mxu0 0.0
        %1004 = vmatprep.subr.mxu0 0.0
        %1005 = vmatpush1.msra.mxu0 0.0
        %1006 = vmatprep.subr.mxu0 0.0
        %1007 = vmatpush1.msra.mxu0 0.0
        %1008 = vmatprep.subr.mxu0 0.0
        %1009 = vmatpush1.msra.mxu0 0.0
        %1010 = vmatprep.subr.mxu0 0.0
        %1011 = vmatpush1.msra.mxu0 0.0
        %1012 = vmatprep.subr.mxu0 0.0
        %1013 = vmatpush1.msra.mxu0 0.0
        %1014 = vmatprep.subr.mxu0 0.0
        %1015 = vmatpush1.msra.mxu0 0.0
        %1016 = vmatprep.subr.mxu0 0.0
        %1017 = vmatpush1.msra.mxu0 0.0
        %1018 = vmatprep.subr.mxu0 0.0
        %1019 = vmatpush1.msra.mxu0 0.0
        %1020 = vmatprep.subr.mxu0 0.0
        %1021 = vmatpush1.msra.mxu0 0.0
        %1022 = vmatprep.subr.mxu0 0.0
        %1023 = vmatpush1.msra.mxu0 0.0
        %1024 = vmatprep.subr.mxu0 0.0
        %1025 = vmatpush1.msra.mxu0 0.0
        %1026 = vmatprep.subr.mxu0 0.0
        %1027 = vmatpush1.msra.mxu0 0.0
        %1028 = vmatprep.subr.mxu0 0.0
        %1029 = vmatpush1.msra.mxu0 0.0
        %1030 = vmatprep.subr.mxu0 0.0
        %1031 = vmatpush1.msra.mxu0 0.0
        %1032 = vmatprep.subr.mxu0 0.0
        %1033 = vmatpush1.msra.mxu0 0.0
        %1034 = vmatprep.subr.mxu0 0.0
        %1035 = vmatpush1.msra.mxu0 0.0
        %1036 = vmatprep.subr.mxu0 0.0
        %1037 = vmatpush1.msra.mxu0 0.0
        %1038 = vmatprep.subr.mxu0 0.0
        %1039 = vmatpush1.msra.mxu0 0.0
        %1040 = vmatprep.subr.mxu0 0.0
        %1041 = vmatpush1.msra.mxu0 0.0
        %1042 = vmatprep.subr.mxu0 0.0
        %1043 = vmatpush1.msra.mxu0 0.0
        %1044 = vmatprep.subr.mxu0 0.0
        %1045 = vmatpush1.msra.mxu0 0.0
        %1046 = vmatprep.subr.mxu0 0.0
        %1047 = vmatpush1.msra.mxu0 0.0
        %1048 = vmatprep.subr.mxu0 0.0
        %1049 = vmatpush1.msra.mxu0 0.0
        %1050 = vmatprep.subr.mxu0 0.0
        %1051 = vmatpush1.msra.mxu0 0.0
        %1052 = vmatprep.subr.mxu0 0.0
        %1053 = vmatpush1.msra.mxu0 0.0
        %1054 = vmatprep.subr.mxu0 0.0
        %1055 = vmatpush1.msra.mxu0 0.0
        %1056 = vmatprep.subr.mxu0 0.0
        %1057 = vmatpush1.msra.mxu0 0.0
        %1058 = vmatprep.subr.mxu0 0.0
        %1059 = vmatpush1.msra.mxu0 0.0
        %1060 = vmatprep.subr.mxu0 0.0
        %1061 = vmatpush1.msra.mxu0 0.0
        %1062 = vmatprep.subr.mxu0 0.0
        %1063 = vmatpush1.msra.mxu0 0.0
        %1064 = vmatprep.mubr.f32.mxu0 0.0
        %1065 = vmatmul.mubr.f32.gmra.mrb[0].mxu0 %v998
        %v1066 = vpop.f32.mrb[0].mxu0
        %v1067 = vadd.f32 0.0, %v1066
        %v1068 = vpop.f32.mrb[0].mxu0
        %1069 = vdwg.mxu0
        %v1070 = vsel %vm566, %v690, 0
        %1072 = vmatprep.subr.mxu0 0.0
        %1073 = vmatpush1.msra.mxu0 %v472
        %1074 = vmatprep.subr.mxu0 0.0
        %1075 = vmatpush1.msra.mxu0 0.0
        %1076 = vmatprep.subr.mxu0 0.0
        %1077 = vmatpush1.msra.mxu0 0.0
        %1078 = vmatprep.subr.mxu0 0.0
        %1079 = vmatpush1.msra.mxu0 0.0
        %1080 = vmatprep.subr.mxu0 0.0
        %1081 = vmatpush1.msra.mxu0 0.0
        %1082 = vmatprep.subr.mxu0 0.0
        %1083 = vmatpush1.msra.mxu0 0.0
        %1084 = vmatprep.subr.mxu0 0.0
        %1085 = vmatpush1.msra.mxu0 0.0
        %1086 = vmatprep.subr.mxu0 0.0
        %1087 = vmatpush1.msra.mxu0 0.0
        %1088 = vmatprep.subr.mxu0 0.0
        %1089 = vmatpush1.msra.mxu0 0.0
        %1090 = vmatprep.subr.mxu0 0.0
        %1091 = vmatpush1.msra.mxu0 0.0
        %1092 = vmatprep.subr.mxu0 0.0
        %1093 = vmatpush1.msra.mxu0 0.0
        %1094 = vmatprep.subr.mxu0 0.0
        %1095 = vmatpush1.msra.mxu0 0.0
        %1096 = vmatprep.subr.mxu0 0.0
        %1097 = vmatpush1.msra.mxu0 0.0
        %1098 = vmatprep.subr.mxu0 0.0
        %1099 = vmatpush1.msra.mxu0 0.0
        %1100 = vmatprep.subr.mxu0 0.0
        %1101 = vmatpush1.msra.mxu0 0.0
        %1102 = vmatprep.subr.mxu0 0.0
        %1103 = vmatpush1.msra.mxu0 0.0
        %1104 = vmatprep.subr.mxu0 0.0
        %1105 = vmatpush1.msra.mxu0 0.0
        %1106 = vmatprep.subr.mxu0 0.0
        %1107 = vmatpush1.msra.mxu0 0.0
        %1108 = vmatprep.subr.mxu0 0.0
        %1109 = vmatpush1.msra.mxu0 0.0
        %1110 = vmatprep.subr.mxu0 0.0
        %1111 = vmatpush1.msra.mxu0 0.0
        %1112 = vmatprep.subr.mxu0 0.0
        %1113 = vmatpush1.msra.mxu0 0.0
        %1114 = vmatprep.subr.mxu0 0.0
        %1115 = vmatpush1.msra.mxu0 0.0
        %1116 = vmatprep.subr.mxu0 0.0
        %1117 = vmatpush1.msra.mxu0 0.0
        %1118 = vmatprep.subr.mxu0 0.0
        %1119 = vmatpush1.msra.mxu0 0.0
        %1120 = vmatprep.subr.mxu0 0.0
        %1121 = vmatpush1.msra.mxu0 0.0
        %1122 = vmatprep.subr.mxu0 0.0
        %1123 = vmatpush1.msra.mxu0 0.0
        %1124 = vmatprep.subr.mxu0 0.0
        %1125 = vmatpush1.msra.mxu0 0.0
        %1126 = vmatprep.subr.mxu0 0.0
        %1127 = vmatpush1.msra.mxu0 0.0
        %1128 = vmatprep.subr.mxu0 0.0
        %1129 = vmatpush1.msra.mxu0 0.0
        %1130 = vmatprep.subr.mxu0 0.0
        %1131 = vmatpush1.msra.mxu0 0.0
        %1132 = vmatprep.subr.mxu0 0.0
        %1133 = vmatpush1.msra.mxu0 0.0
        %1134 = vmatprep.subr.mxu0 0.0
        %1135 = vmatpush1.msra.mxu0 0.0
        %1136 = vmatprep.mubr.f32.mxu0 0.0
        %1137 = vmatmul.mubr.f32.gmra.mrb[0].mxu0 %v1070
        %v1138 = vpop.f32.mrb[0].mxu0
        %v1139 = vadd.f32 0.0, %v1138
        %v1140 = vpop.f32.mrb[0].mxu0
        %1141 = vdwg.mxu0
        %v1142 = vsel %vm566, %v694, 0
        %1144 = vmatprep.subr.mxu0 0.0
        %1145 = vmatpush1.msra.mxu0 %v477
        %1146 = vmatprep.subr.mxu0 0.0
        %1147 = vmatpush1.msra.mxu0 0.0
        %1148 = vmatprep.subr.mxu0 0.0
        %1149 = vmatpush1.msra.mxu0 0.0
        %1150 = vmatprep.subr.mxu0 0.0
        %1151 = vmatpush1.msra.mxu0 0.0
        %1152 = vmatprep.subr.mxu0 0.0
        %1153 = vmatpush1.msra.mxu0 0.0
        %1154 = vmatprep.subr.mxu0 0.0
        %1155 = vmatpush1.msra.mxu0 0.0
        %1156 = vmatprep.subr.mxu0 0.0
        %1157 = vmatpush1.msra.mxu0 0.0
        %1158 = vmatprep.subr.mxu0 0.0
        %1159 = vmatpush1.msra.mxu0 0.0
        %1160 = vmatprep.subr.mxu0 0.0
        %1161 = vmatpush1.msra.mxu0 0.0
        %1162 = vmatprep.subr.mxu0 0.0
        %1163 = vmatpush1.msra.mxu0 0.0
        %1164 = vmatprep.subr.mxu0 0.0
        %1165 = vmatpush1.msra.mxu0 0.0
        %1166 = vmatprep.subr.mxu0 0.0
        %1167 = vmatpush1.msra.mxu0 0.0
        %1168 = vmatprep.subr.mxu0 0.0
        %1169 = vmatpush1.msra.mxu0 0.0
        %1170 = vmatprep.subr.mxu0 0.0
        %1171 = vmatpush1.msra.mxu0 0.0
        %1172 = vmatprep.subr.mxu0 0.0
        %1173 = vmatpush1.msra.mxu0 0.0
        %1174 = vmatprep.subr.mxu0 0.0
        %1175 = vmatpush1.msra.mxu0 0.0
        %1176 = vmatprep.subr.mxu0 0.0
        %1177 = vmatpush1.msra.mxu0 0.0
        %1178 = vmatprep.subr.mxu0 0.0
        %1179 = vmatpush1.msra.mxu0 0.0
        %1180 = vmatprep.subr.mxu0 0.0
        %1181 = vmatpush1.msra.mxu0 0.0
        %1182 = vmatprep.subr.mxu0 0.0
        %1183 = vmatpush1.msra.mxu0 0.0
        %1184 = vmatprep.subr.mxu0 0.0
        %1185 = vmatpush1.msra.mxu0 0.0
        %1186 = vmatprep.subr.mxu0 0.0
        %1187 = vmatpush1.msra.mxu0 0.0
        %1188 = vmatprep.subr.mxu0 0.0
        %1189 = vmatpush1.msra.mxu0 0.0
        %1190 = vmatprep.subr.mxu0 0.0
        %1191 = vmatpush1.msra.mxu0 0.0
        %1192 = vmatprep.subr.mxu0 0.0
        %1193 = vmatpush1.msra.mxu0 0.0
        %1194 = vmatprep.subr.mxu0 0.0
        %1195 = vmatpush1.msra.mxu0 0.0
        %1196 = vmatprep.subr.mxu0 0.0
        %1197 = vmatpush1.msra.mxu0 0.0
        %1198 = vmatprep.subr.mxu0 0.0
        %1199 = vmatpush1.msra.mxu0 0.0
        %1200 = vmatprep.subr.mxu0 0.0
        %1201 = vmatpush1.msra.mxu0 0.0
        %1202 = vmatprep.subr.mxu0 0.0
        %1203 = vmatpush1.msra.mxu0 0.0
        %1204 = vmatprep.subr.mxu0 0.0
        %1205 = vmatpush1.msra.mxu0 0.0
        %1206 = vmatprep.subr.mxu0 0.0
        %1207 = vmatpush1.msra.mxu0 0.0
        %1208 = vmatprep.mubr.f32.mxu0 0.0
        %1209 = vmatmul.mubr.f32.gmra.mrb[0].mxu0 %v1142
        %v1210 = vpop.f32.mrb[0].mxu0
        %v1211 = vadd.f32 0.0, %v1210
        %v1212 = vpop.f32.mrb[0].mxu0
        %1213 = vdwg.mxu0
        %v1214 = vsel %vm566, %v698, 0
        %1216 = vmatprep.subr.mxu0 0.0
        %1217 = vmatpush1.msra.mxu0 %v482
        %1218 = vmatprep.subr.mxu0 0.0
        %1219 = vmatpush1.msra.mxu0 0.0
        %1220 = vmatprep.subr.mxu0 0.0
        %1221 = vmatpush1.msra.mxu0 0.0
        %1222 = vmatprep.subr.mxu0 0.0
        %1223 = vmatpush1.msra.mxu0 0.0
        %1224 = vmatprep.subr.mxu0 0.0
        %1225 = vmatpush1.msra.mxu0 0.0
        %1226 = vmatprep.subr.mxu0 0.0
        %1227 = vmatpush1.msra.mxu0 0.0
        %1228 = vmatprep.subr.mxu0 0.0
        %1229 = vmatpush1.msra.mxu0 0.0
        %1230 = vmatprep.subr.mxu0 0.0
        %1231 = vmatpush1.msra.mxu0 0.0
        %1232 = vmatprep.subr.mxu0 0.0
        %1233 = vmatpush1.msra.mxu0 0.0
        %1234 = vmatprep.subr.mxu0 0.0
        %1235 = vmatpush1.msra.mxu0 0.0
        %1236 = vmatprep.subr.mxu0 0.0
        %1237 = vmatpush1.msra.mxu0 0.0
        %1238 = vmatprep.subr.mxu0 0.0
        %1239 = vmatpush1.msra.mxu0 0.0
        %1240 = vmatprep.subr.mxu0 0.0
        %1241 = vmatpush1.msra.mxu0 0.0
        %1242 = vmatprep.subr.mxu0 0.0
        %1243 = vmatpush1.msra.mxu0 0.0
        %1244 = vmatprep.subr.mxu0 0.0
        %1245 = vmatpush1.msra.mxu0 0.0
        %1246 = vmatprep.subr.mxu0 0.0
        %1247 = vmatpush1.msra.mxu0 0.0
        %1248 = vmatprep.subr.mxu0 0.0
        %1249 = vmatpush1.msra.mxu0 0.0
        %1250 = vmatprep.subr.mxu0 0.0
        %1251 = vmatpush1.msra.mxu0 0.0
        %1252 = vmatprep.subr.mxu0 0.0
        %1253 = vmatpush1.msra.mxu0 0.0
        %1254 = vmatprep.subr.mxu0 0.0
        %1255 = vmatpush1.msra.mxu0 0.0
        %1256 = vmatprep.subr.mxu0 0.0
        %1257 = vmatpush1.msra.mxu0 0.0
        %1258 = vmatprep.subr.mxu0 0.0
        %1259 = vmatpush1.msra.mxu0 0.0
        %1260 = vmatprep.subr.mxu0 0.0
        %1261 = vmatpush1.msra.mxu0 0.0
        %1262 = vmatprep.subr.mxu0 0.0
        %1263 = vmatpush1.msra.mxu0 0.0
        %1264 = vmatprep.subr.mxu0 0.0
        %1265 = vmatpush1.msra.mxu0 0.0
        %1266 = vmatprep.subr.mxu0 0.0
        %1267 = vmatpush1.msra.mxu0 0.0
        %1268 = vmatprep.subr.mxu0 0.0
        %1269 = vmatpush1.msra.mxu0 0.0
        %1270 = vmatprep.subr.mxu0 0.0
        %1271 = vmatpush1.msra.mxu0 0.0
        %1272 = vmatprep.subr.mxu0 0.0
        %1273 = vmatpush1.msra.mxu0 0.0
        %1274 = vmatprep.subr.mxu0 0.0
        %1275 = vmatpush1.msra.mxu0 0.0
        %1276 = vmatprep.subr.mxu0 0.0
        %1277 = vmatpush1.msra.mxu0 0.0
        %1278 = vmatprep.subr.mxu0 0.0
        %1279 = vmatpush1.msra.mxu0 0.0
        %1280 = vmatprep.mubr.f32.mxu0 0.0
        %1281 = vmatmul.mubr.f32.gmra.mrb[0].mxu0 %v1214
        %v1282 = vpop.f32.mrb[0].mxu0
        %v1283 = vadd.f32 0.0, %v1282
        %v1284 = vpop.f32.mrb[0].mxu0
        %1285 = vdwg.mxu0
        %v1287 = vrot.slane %v709, 1
        %v1288 = vrot.slane %v709, 2
        %v1289 = vrot.slane %v709, 3
        %v1290 = vrot.slane %v709, 4
        %v1291 = vrot.slane %v709, 5
        %v1292 = vrot.slane %v709, 6
        %v1293 = vrot.slane %v709, 7
        %v1302 = vrcp.pop %v709
        %v1303 = vmul.f32 %v779, %v1302
        %v1304 = vrcp.pop %v1287
        %v1305 = vmul.f32 %v851, %v1304
        %v1306 = vrcp.pop %v1288
        %v1307 = vmul.f32 %v923, %v1306
        %v1308 = vrcp.pop %v1289
        %v1309 = vmul.f32 %v995, %v1308
        %v1310 = vrcp.pop %v1290
        %v1311 = vmul.f32 %v1067, %v1310
        %v1312 = vrcp.pop %v1291
        %v1313 = vmul.f32 %v1139, %v1312
        %v1314 = vrcp.pop %v1292
        %v1315 = vmul.f32 %v1211, %v1314
        %v1316 = vrcp.pop %v1293
        %v1317 = vmul.f32 %v1283, %v1316
        %v1326 = vrot.slane %v1305, 7
        %v1327 = vsel %vm551, %v1326, %v1303
        %v1328 = vrot.slane %v1307, 6
        %v1329 = vsel %vm553, %v1328, %v1327
        %v1330 = vrot.slane %v1309, 5
        %v1331 = vsel %vm555, %v1330, %v1329
        %v1332 = vrot.slane %v1311, 4
        %v1333 = vsel %vm557, %v1332, %v1331
        %v1334 = vrot.slane %v1313, 3
        %v1335 = vsel %vm559, %v1334, %v1333
        %v1336 = vrot.slane %v1315, 2
        %v1337 = vsel %vm561, %v1336, %v1335
        %v1338 = vrot.slane %v1317, 1
        %v1339 = vsel %vm563, %v1338, %v1337
        %1341 = vst.msk [vmem:[%s203] sm:$0xff] %vm242, %v1339
        %s1342 = sand.u32 %s97, 1
        %s1343 = scalar_lea.sflag [#allocation4], %s1342
        %s1344 = sand.u32 %s97, 1
        %s1345 = smul.addr %s1344, 8
        %s1346 = scalar_lea.vmem [#allocation7], %s1345
        // Predicated region
        $region41: #{tpu_custom_call.1} parent=31 // pred_check
          %p1347 = pneg %p107
        $region42: #{tpu_custom_call.1} parent=31 // pred_check_branch
          %1349 = sbr.rel (%p1347) target = $region44
        $region43: #{tpu_custom_call.1} parent=31 // pred_region
          %s1351 = ssub.s32 128, 128
          %1352 = vsyncadd %s1343, %s1351
          %s1353 = smul.addr %s21, 128
          %s1354 = scalar_lea.hbm %s3, %s1353
          %s1356 = sshll.u32 %s1346, 4
          %s1357 = int_to_ptr.vmem [resolvable:$true] %s1356
          %1359 = dma.vmem_to_hbm [thread:$0]  %s1357, 128, %s1354, %s1343
        $region44: #{tpu_custom_call.1} parent=31 // pred_fallthru
          _
      $region32: #{tpu_custom_call.1} parent=5 // pred_fallthru
        _
      %p1360 = scmp.le.s32.totalorder 2, %s16
      // Predicated region
      $region45: #{tpu_custom_call.1} parent=5 // pred_check
        %p1361 = pneg %p1360
      $region46: #{tpu_custom_call.1} parent=5 // pred_check_branch
        %1363 = sbr.rel (%p1361) target = $region48
      $region47: #{tpu_custom_call.1} parent=5 // pred_region
        %s1364 = ssub.s32 %s16, 2
        // Predicated region
        $region49: #{tpu_custom_call.1} parent=47 // pred_check
          %p1365 = pneg %p113
        $region50: #{tpu_custom_call.1} parent=47 // pred_check_branch
          %1367 = sbr.rel (%p1365) target = $region52
        $region51: #{tpu_custom_call.1} parent=47 // pred_region
          %s1368 = sand.u32 %s98, 1
          %s1369 = scalar_lea.sflag [#allocation4], %s1368
          %s1370 = sand.u32 %s98, 1
          %s1371 = smul.addr %s1370, 8
          %s1372 = scalar_lea.vmem [#allocation7], %s1371
          %1373 = dma.done %s1369, 128
        $region52: #{tpu_custom_call.1} parent=47 // pred_fallthru
          _
      $region48: #{tpu_custom_call.1} parent=5 // pred_fallthru
        _
    $region6: #{tpu_custom_call.1} parent=1 // loop_footer
      %s20 = sadd.s32 1, %s16
    $region7: #{tpu_custom_call.1} parent=1 // loop_footer_branch
      %15 = sbr.rel target = $region3
    $region8: #{tpu_custom_call.1} parent=1 // loop_exit
      _
    %1374 = vsyncpa [#allocation3], 1
    %s1375 = scalar_lea.sflag [#allocation3], 1
    %1376 = vsyncpa %s1375, 1
    %1377 = vsyncpa [#allocation6], 1
    %1378 = vsyncpa [#allocation4], 1
    %s1379 = scalar_lea.sflag [#allocation4], 1
    %1380 = vsyncpa %s1379, 1

</llo_original>
